<compile_context>
chip_gen: v6e
topology: v6e:2x2x1
jax: 0.10.0
libtpu: 0.0.40
codegen_flags: <defaults>
</compile_context>

<pallas_src>
import functools

import jax
import jax.numpy as jnp
from jax.experimental import pallas as pl
from jax.experimental.pallas import tpu as pltpu


_MAX_TILE_N = 2048
_DEFAULT_VMEM_CAP = 64 * 1024 * 1024  # conservative fallback (v7x per-TC VMEM)


def _vmem_capacity_bytes():
    try:
        cap = int(pltpu.get_tpu_info().vmem_capacity_bytes)
        if cap > 0:
            return cap
    except Exception:
        pass
    return _DEFAULT_VMEM_CAP


def _min_sublanes(itemsize):
    return {4: 8, 2: 16, 1: 32}.get(itemsize, 8)


# --------------------------------------------------------------------------
# Kernels
# --------------------------------------------------------------------------
def _layernorm_kernel(x_ref, g_ref, o_ref, *, eps):
    # x_ref: (TILE_B, C, TILE_N); g_ref: (1, C, 1); o_ref: (TILE_B, C, TILE_N)
    # Reduction is over C only, so every lane column is independent and a
    # partial N-tile at the array edge is safe (its writes are masked out).
    x = x_ref[...].astype(jnp.float32)                 # f32 accumulation
    mean = jnp.mean(x, axis=1, keepdims=True)          # (TILE_B, 1, TILE_N)
    xm = x - mean                                      # reused for var AND output
    var = jnp.mean(xm * xm, axis=1, keepdims=True)     # unbiased=False
    inv = jax.lax.rsqrt(var + eps)                     # small (TILE_B,1,TILE_N)
    g = g_ref[...].astype(jnp.float32)                 # (1, C, 1)
    o_ref[...] = ((xm * inv) * g).astype(o_ref.dtype)  # no full-tile scale temp


def _layernorm_kernel_2d(x_ref, g_ref, o_ref, *, eps):
    # Lane-dense small-N layout: x_ref (C, TILE_M), reduction over axis 0.
    x = x_ref[...].astype(jnp.float32)
    mean = jnp.mean(x, axis=0, keepdims=True)
    xm = x - mean
    var = jnp.mean(xm * xm, axis=0, keepdims=True)
    inv = jax.lax.rsqrt(var + eps)
    g = g_ref[...].astype(jnp.float32)                 # (C, 1)
    o_ref[...] = ((xm * inv) * g).astype(o_ref.dtype)


# --------------------------------------------------------------------------
# Tiling heuristics
# --------------------------------------------------------------------------
def _choose_tiles(B, C, N, itemsize, vmem_limit_bytes):
    """Pick (tile_b, tile_n) for the main (N >= 128) path."""
    c_pad = -(-C // _min_sublanes(itemsize)) * _min_sublanes(itemsize)

    # Per *padded* block element: double-buffered input + output (4*itemsize)
    # plus ~2 concurrent full-tile f32 temporaries (f32 upcast, x - mean).
    bytes_per_elem = 4 * itemsize + 2 * 4
    budget_elems = max(128 * c_pad,
                       int(vmem_limit_bytes * 0.75) // bytes_per_elem)

    # ---- lane tile ----
    n_full = (N // 128) * 128
    cap = max(128, min(_MAX_TILE_N, n_full,
                       ((budget_elems // c_pad) // 128) * 128))
    tile_n = cap
    if N % 128 == 0:
        # Prefer a 128-multiple divisor of N so every N-block is full.
        d = cap
        while d >= 128 and N % d:
            d -= 128
        if d >= 128:
            tile_n = d

    # ---- batch tile (amortizes per-grid-step overhead when C*N is small) ----
    tile_b = max(1, min(B, budget_elems // (c_pad * tile_n)))
    while B % tile_b:
        tile_b -= 1

    # ---- keep enough grid steps for pipelining + both v7x TensorCores ----
    def steps(tb, tn):
        return (B // tb) * (-(-N // tn))

    target_steps = 8
    while steps(tile_b, tile_n) < target_steps and tile_b > 1:
        tb = tile_b - 1
        while B % tb:
            tb -= 1
        tile_b = tb
    while steps(tile_b, tile_n) < target_steps and tile_n > 128:
        nt = max(128, ((tile_n // 2 + 127) // 128) * 128)
        if nt >= tile_n:
            break
        tile_n = nt

    return tile_b, tile_n


# --------------------------------------------------------------------------
# Wrappers
# --------------------------------------------------------------------------
def _layernorm_small_n(x, g, eps, vmem_limit, cost):
    """N < 128: lane-dense (C, B*N) layout so stores are not lane-masked."""
    B, C, N = x.shape
    M = B * N
    x2d = jnp.transpose(x, (1, 0, 2)).reshape(C, M)
    g2d = jnp.reshape(g, (C, 1))

    itemsize = x.dtype.itemsize
    c_pad = -(-C // _min_sublanes(itemsize)) * _min_sublanes(itemsize)
    bytes_per_elem = 4 * itemsize + 2 * 4
    budget_lanes = max(128, ((int(vmem_limit * 0.75)
                              // (bytes_per_elem * c_pad)) // 128) * 128)

    if M <= 512:
        tile_m = M                      # full array = single block (allowed)
    else:
        tile_m = min(_MAX_TILE_N, (M // 128) * 128, budget_lanes)
    grid = (pl.cdiv(M, tile_m),)

    kernel = functools.partial(_layernorm_kernel_2d, eps=eps)
    out2d = pl.pallas_call(
        kernel,
        out_shape=jax.ShapeDtypeStruct((C, M), x.dtype),
        grid_spec=pltpu.PrefetchScalarGridSpec(
            num_scalar_prefetch=0,
            grid=grid,
            in_specs=[
                pl.BlockSpec((C, tile_m), lambda m: (0, m)),
                pl.BlockSpec((C, 1), lambda m: (0, 0)),
            ],
            out_specs=pl.BlockSpec((C, tile_m), lambda m: (0, m)),
        ),
        compiler_params=pltpu.CompilerParams(
            dimension_semantics=("parallel",),
            vmem_limit_bytes=vmem_limit,
        ),
        cost_estimate=cost,
    )(x2d, g2d)
    return jnp.transpose(out2d.reshape(C, B, N), (1, 0, 2))


def layernorm(x, g):
    """x: (B, C, N), g: (1, C, 1). Matches the PyTorch LayerNorm module."""
    B, C, N = x.shape
    # eps selection mirrors the PyTorch module (dtype-dependent, trace-time).
    eps = 1e-05 if x.dtype == jnp.float32 else 1e-03
    itemsize = x.dtype.itemsize

    # Generation-aware scoped-VMEM limit: 48 MiB on 64-MiB (v7x) parts,
    # 96 MiB on 128-MiB (v5e/v6e) parts. Tile budgets are derived from it.
    vmem_cap = _vmem_capacity_bytes()
    vmem_limit = min((vmem_cap * 3) // 4, 96 * 1024 * 1024)

    # Advisory cost estimate: read + write each element once; ~7 VALU ops and
    # one rsqrt per output column.
    cost = pl.CostEstimate(
        flops=7 * B * C * N,
        transcendentals=B * N,
        bytes_accessed=2 * B * C * N * itemsize + C * g.dtype.itemsize,
    )

    if N < 128:
        return _layernorm_small_n(x, g, eps, vmem_limit, cost)

    tile_b, tile_n = _choose_tiles(B, C, N, itemsize, vmem_limit)
    grid = (B // tile_b, pl.cdiv(N, tile_n))

    kernel = functools.partial(_layernorm_kernel, eps=eps)
    return pl.pallas_call(
        kernel,
        out_shape=jax.ShapeDtypeStruct((B, C, N), x.dtype),
        grid_spec=pltpu.PrefetchScalarGridSpec(
            num_scalar_prefetch=0,
            grid=grid,
            in_specs=[
                pl.BlockSpec((tile_b, C, tile_n), lambda b, n: (b, 0, n)),
                pl.BlockSpec((1, C, 1), lambda b, n: (0, 0, 0)),
            ],
            out_specs=pl.BlockSpec((tile_b, C, tile_n), lambda b, n: (b, 0, n)),
        ),
        compiler_params=pltpu.CompilerParams(
            # Both grid axes independent -> shard across TCs on v7x; harmless
            # no-op on single-TC v5e/v6e.
            dimension_semantics=("parallel", "parallel"),
            vmem_limit_bytes=vmem_limit,
        ),
        cost_estimate=cost,
    )(x, g)


def layernorm_ref(x, g):
    eps = 1e-05 if x.dtype == jnp.float32 else 1e-03
    xf = x.astype(jnp.float32)
    mean = jnp.mean(xf, axis=1, keepdims=True)
    var = jnp.mean((xf - mean) ** 2, axis=1, keepdims=True)
    return ((xf - mean) * jax.lax.rsqrt(var + eps)
            * g.astype(jnp.float32)).astype(x.dtype)


if __name__ == "__main__":
    key = jax.random.PRNGKey(0)
    k1, k2 = jax.random.split(key, 2)

    # Small test matching the module's natural shapes (B, C, N): exercises the
    # lane-dense small-N path.
    B, C, N = 2, 4, 16
    x = jax.random.normal(k1, (B, C, N), dtype=jnp.float32)
    g = jnp.ones((1, C, 1), dtype=jnp.float32)  # nn.Parameter(torch.ones(1, dim, 1))

    out = layernorm(x, g)
    jax.block_until_ready(out)
    ref = layernorm_ref(x, g)
    assert out.shape == (B, C, N)
    assert jnp.allclose(out, ref, atol=1e-5, rtol=1e-5)

    # A modest lane-tiled case to exercise the (B-tile, N-tile) grid path.
    B2, C2, N2 = 2, 8, 640
    x2 = jax.random.normal(k2, (B2, C2, N2), dtype=jnp.float32) * 3.0 + 1.5
    g2 = jnp.ones((1, C2, 1), dtype=jnp.float32)
    out2 = layernorm(x2, g2)
    jax.block_until_ready(out2)
    ref2 = layernorm_ref(x2, g2)
    assert out2.shape == (B2, C2, N2)
    assert jnp.allclose(out2, ref2, atol=1e-4, rtol=1e-4)

    print("KERNEL_OK")
</pallas_src>

<mosaic_0001>
module attributes {stable_mosaic.version = 11 : i64} {
  func.func @_layernorm_kernel_2d(%arg0: i32, %arg1: memref<4x32xf32, #tpu.memory_space<vmem>>, %arg2: memref<4x1xf32, #tpu.memory_space<vmem>>, %arg3: memref<4x32xf32, #tpu.memory_space<vmem>>) attributes {dimension_semantics = [#tpu.dimension_semantics<parallel>], iteration_bounds = array<i64: 1>, scalar_prefetch = 0 : i64, scratch_operands = 0 : i64, tpu.core_type = #tpu.core_type<tc>, window_params = [{transform_indices = @transform_0, window_bounds = array<i64: 4, 32>}, {pipeline_mode = #tpu.pipeline_mode<synchronous>, transform_indices = @transform_1, window_bounds = array<i64: 4, 1>}, {transform_indices = @transform_2, window_bounds = array<i64: 4, 32>}]} {
    %c0 = arith.constant 0 : index
    %c0_0 = arith.constant 0 : index
    %0 = vector.load %arg1[%c0, %c0_0] : memref<4x32xf32, #tpu.memory_space<vmem>>, vector<4x32xf32>
    %cst = arith.constant dense<0.000000e+00> : vector<32xf32>
    %1 = vector.multi_reduction <add>, %0, %cst [0] : vector<4x32xf32> to vector<32xf32>
    %2 = vector.shape_cast %1 : vector<32xf32> to vector<1x32xf32>
    %cst_1 = arith.constant 4.000000e+00 : f32
    %3 = vector.broadcast %cst_1 : f32 to vector<1x32xf32>
    %4 = arith.divf %2, %3 : vector<1x32xf32>
    %5 = vector.broadcast %4 : vector<1x32xf32> to vector<4x32xf32>
    %6 = arith.subf %0, %5 : vector<4x32xf32>
    %7 = arith.mulf %6, %6 : vector<4x32xf32>
    %cst_2 = arith.constant dense<0.000000e+00> : vector<32xf32>
    %8 = vector.multi_reduction <add>, %7, %cst_2 [0] : vector<4x32xf32> to vector<32xf32>
    %9 = vector.shape_cast %8 : vector<32xf32> to vector<1x32xf32>
    %cst_3 = arith.constant 4.000000e+00 : f32
    %10 = vector.broadcast %cst_3 : f32 to vector<1x32xf32>
    %11 = arith.divf %9, %10 : vector<1x32xf32>
    %cst_4 = arith.constant 9.99999974E-6 : f32
    %12 = vector.broadcast %cst_4 : f32 to vector<1x32xf32>
    %13 = arith.addf %11, %12 : vector<1x32xf32>
    %14 = math.rsqrt %13 : vector<1x32xf32>
    %c0_5 = arith.constant 0 : index
    %c0_6 = arith.constant 0 : index
    %15 = vector.load %arg2[%c0_5, %c0_6] : memref<4x1xf32, #tpu.memory_space<vmem>>, vector<4x1xf32>
    %16 = vector.broadcast %14 : vector<1x32xf32> to vector<4x32xf32>
    %17 = arith.mulf %6, %16 : vector<4x32xf32>
    %18 = vector.broadcast %15 : vector<4x1xf32> to vector<4x32xf32>
    %19 = arith.mulf %17, %18 : vector<4x32xf32>
    %c0_7 = arith.constant 0 : index
    %c0_8 = arith.constant 0 : index
    %20 = vector.load %arg3[%c0_7, %c0_8] : memref<4x32xf32, #tpu.memory_space<vmem>>, vector<4x32xf32>
    tpu.vector_store %arg3[%c0_7, %c0_8], %19 {strides = array<i32>} : memref<4x32xf32, #tpu.memory_space<vmem>>, vector<4x32xf32>,
    return
  }
  func.func @transform_0(%arg0: i32) -> (i32, i32) {
    %c0_i32 = arith.constant 0 : i32
    %c0_i32_0 = arith.constant 0 : i32
    return %c0_i32, %arg0 : i32, i32
  }
  func.func @transform_1(%arg0: i32) -> (i32, i32) {
    %c0_i32 = arith.constant 0 : i32
    %c0_i32_0 = arith.constant 0 : i32
    %c0_i32_1 = arith.constant 0 : i32
    return %c0_i32, %c0_i32_0 : i32, i32
  }
  func.func @transform_2(%arg0: i32) -> (i32, i32) {
    %c0_i32 = arith.constant 0 : i32
    %c0_i32_0 = arith.constant 0 : i32
    return %c0_i32, %arg0 : i32, i32
  }
}

</mosaic_0001>

<llo_original>
// kernel: tpu_custom_call.1
$region0: #{tpu_custom_call.1}
  #allocation0 [shape = 'u32[]', space=smem, size = 0x4, offset = 0x4, fixed_abs, tag = 'smem constant byte address 0x4 - core index']
  #allocation1 [shape = 'u32[144,128]{1,0:T(1,128)}', space=vmem, size = 0x12000, scoped, tag = 'internal scratch']
  %s0 = inlined_call_operand.vmem [shape: f32[4,32], index: 0, kind: input, shape index: {}]
  %s1 = inlined_call_operand.vmem [shape: f32[4,1], index: 1, kind: input, shape index: {}]
  %s2 = inlined_call_operand.hbm [shape: f32[4,32], index: 2, kind: output, shape index: {}]
  %s3 = sld [smem:[#allocation0]]
  $region18: #{tpu_custom_call.1} parent=0
    _
  %s5 = ssub.s32 1, %s3
  %s6 = scalar_select 0, %s5, %s3
  $region1: #{tpu_custom_call.1} parent=0
    #allocation2 [shape = 'u8[2048]{0}', space=vmem, size = 0x800, scoped, tag = 'output window, operand 0, single buffered']
    #allocation3 [shape = 's32[1]{0}', space=sflag, size = 0x4, scoped, tag = 'scoped memory for tpu_custom_call.1']
    %7 = vsyncpa [#allocation3], 0
    // Predicated region
    $region2: #{tpu_custom_call.1} parent=1 // pred_check
      _
    $region3: #{tpu_custom_call.1} parent=1 // pred_check_branch
      %9 = sbr.rel (0) target = $region5
    $region4: #{tpu_custom_call.1} parent=1 // pred_region
      _
    $region5: #{tpu_custom_call.1} parent=1 // pred_fallthru
      _
    // Predicated region
    $region6: #{tpu_custom_call.1} parent=1 // pred_check
      _
    $region7: #{tpu_custom_call.1} parent=1 // pred_check_branch
      %11 = sbr.rel (0) target = $region9
    $region8: #{tpu_custom_call.1} parent=1 // pred_region
      _
    $region9: #{tpu_custom_call.1} parent=1 // pred_fallthru
      _
    %v12 = vld [vmem:[%s0] sm:$0xf]
    %vm13 = vcmask 257024
    %v14 = vsel %vm13, %v12, 0.0
    %v15 = vrot.slane %v14, 4
    %v16 = vadd.f32 %v14, %v15
    %v17 = vrot.slane %v16, 2
    %v18 = vadd.f32 %v16, %v17
    %v19 = vrot.slane %v18, 1
    %v20 = vadd.f32 %v18, %v19
    %v21 = vrcp.pop 4.0
    %v22 = vmul.f32 %v20, %v21
    %v23 = vsub.f32 %v12, %v22
    %v24 = vmul.f32 %v23, %v23
    %v25 = vsel %vm13, %v24, 0.0
    %v26 = vrot.slane %v25, 4
    %v27 = vadd.f32 %v25, %v26
    %v28 = vrot.slane %v27, 2
    %v29 = vadd.f32 %v27, %v28
    %v30 = vrot.slane %v29, 1
    %v31 = vadd.f32 %v29, %v30
    %v32 = vmul.f32 %v31, %v21
    %v33 = vadd.f32 %v32, 1e-05
    %v34 = vrsqrt.pop %v33
    %v35 = vld [vmem:[%s1] sm:$0xf]
    %v36 = vmul.f32 %v23, %v34
    %38 = vset.pattern.permute.xlu0 0
    %39 = vperm.xlu0 %38, %v35
    %v40 = vpop.permute.xlu0 %39
    %v42 = vmul.f32 %v36, %v40
    %43 = vst.msk [vmem:[#allocation2] sm:$0xf] %vm13, %v42
    // Predicated region
    $region10: #{tpu_custom_call.1} parent=1 // pred_check
      _
    $region11: #{tpu_custom_call.1} parent=1 // pred_check_branch
      %45 = sbr.rel (0) target = $region13
    $region12: #{tpu_custom_call.1} parent=1 // pred_region
      %s47 = ssub.s32 64, 64
      %48 = vsyncadd [#allocation3], %s47
      %s50 = sshll.u32 [#allocation2], 4
      %s51 = int_to_ptr.vmem [resolvable:$true] %s50
      %53 = dma.vmem_to_hbm [thread:$0]  %s51, 64, %s2, [#allocation3]
    $region13: #{tpu_custom_call.1} parent=1 // pred_fallthru
      _
    // Predicated region
    $region14: #{tpu_custom_call.1} parent=1 // pred_check
      _
    $region15: #{tpu_custom_call.1} parent=1 // pred_check_branch
      %55 = sbr.rel (0) target = $region17
    $region16: #{tpu_custom_call.1} parent=1 // pred_region
      %56 = dma.done [#allocation3], 64
    $region17: #{tpu_custom_call.1} parent=1 // pred_fallthru
      _
    %57 = vsyncpa [#allocation3], 1

</llo_original>
